<compile_context>
chip_gen: v7x
topology: tpu7x:2x2x1
jax: 0.10.0
libtpu: 0.0.40
codegen_flags: <defaults>
</compile_context>

<pallas_src>
import functools

import jax
import jax.numpy as jnp
from jax.experimental import pallas as pl
from jax.experimental.pallas import tpu as pltpu


def _round_up(n, m):
    return ((n + m - 1) // m) * m


# ---------------------------------------------------------------------------
# Parameter preparation — done ONCE, outside the per-step path.
# ---------------------------------------------------------------------------
def prepare_params(w_i2h, b_i2h, w_i2o, b_i2o, *, input_size, batch_size,
                   weight_dtype=jnp.float32):
    """w_i2h: (H, I+H), w_i2o: (O, I+H) in PyTorch nn.Linear layout.

    Produces fused, padded, transposed weights:
      wx:   (Ip, Np) x-contribution, columns = [hidden | logits]
      wh:   (Hp, Np) h-contribution (the only weight on the serial path)
      brow: (Np,)    fused bias row; padded logit lanes = -inf.
    """
    H = w_i2h.shape[0]
    O = w_i2o.shape[0]
    I = input_size
    assert w_i2h.shape[1] == I + H and w_i2o.shape[1] == I + H

    wdt = jnp.dtype(weight_dtype)
    # bf16 packs 16 rows per vreg sublane group; f32 packs 8.
    b_mult = 16 if wdt == jnp.dtype(jnp.bfloat16) else 8
    Bp = _round_up(max(batch_size, 1), b_mult)
    Ip = _round_up(I, 128)
    Hp = _round_up(H, 128)
    Op = _round_up(O, 128)
    Np = Hp + Op

    wih_t = w_i2h.T.astype(jnp.float32)  # (I+H, H)
    wio_t = w_i2o.T.astype(jnp.float32)  # (I+H, O)

    # Fused weight for the x contribution: (Ip, Hp+Op).
    wx = jnp.zeros((Ip, Np), jnp.float32)
    wx = wx.at[:I, :H].set(wih_t[:I])
    wx = wx.at[:I, Hp:Hp + O].set(wio_t[:I])

    # Fused weight for the h contribution: (Hp, Hp+Op).
    wh = jnp.zeros((Hp, Np), jnp.float32)
    wh = wh.at[:H, :H].set(wih_t[I:])
    wh = wh.at[:H, Hp:Hp + O].set(wio_t[I:])

    # Fused bias row.  Logit pad lanes get -inf so exp() == 0 there and the
    # log-softmax denominator is exact; hidden pad lanes stay 0 so the
    # recurrence through the padded hidden state is exact.
    brow = jnp.zeros((Np,), jnp.float32)
    brow = brow.at[:H].set(b_i2h.astype(jnp.float32))
    brow = brow.at[Hp:Hp + O].set(b_i2o.astype(jnp.float32))
    brow = brow.at[Hp + O:].set(-jnp.inf)

    dims = dict(B=batch_size, I=I, H=H, O=O, Bp=Bp, Ip=Ip, Hp=Hp, Op=Op)
    return dict(wx=wx.astype(wdt), wh=wh.astype(wdt), brow=brow, dims=dims)


# ---------------------------------------------------------------------------
# Fused-sequence kernel: one grid step = Tc recurrence steps, statically
# unrolled.  Wh is VMEM-resident; the running hidden state lives in the
# resident final-hidden output block (no per-step HBM traffic).
# ---------------------------------------------------------------------------
def _rnn_seq_kernel(Hp, Tc, T, Tp, p_ref, h0_ref, wh_ref, out_ref, hstate_ref):
    # p_ref:      (Tc, Bp, Np) f32   precomputed x@Wx + bias for this chunk
    # h0_ref:     (Bp, Hp)     f32   initial hidden (resident)
    # wh_ref:     (Hp, Np)     f32/bf16 fused hidden weight (resident)
    # out_ref:    (Tc, Bp, Op) f32   per-step log-softmax outputs
    # hstate_ref: (Bp, Hp)     f32   resident hidden carry / final hidden
    t = pl.program_id(0)

    @pl.when(t == 0)
    def _():
        hstate_ref[...] = h0_ref[...]

    w = wh_ref[...]
    h = hstate_ref[...]
    for i in range(Tc):  # static unroll: softmax(i) overlaps matmul(i+1)
        acc = jnp.dot(h.astype(w.dtype), w,
                      preferred_element_type=jnp.float32) + p_ref[i]
        h_new = acc[:, :Hp]                       # lane-aligned (Hp % 128 == 0)

        logits = acc[:, Hp:]
        m = jnp.max(logits, axis=-1, keepdims=True)
        shifted = logits - m
        lse = jnp.log(jnp.sum(jnp.exp(shifted), axis=-1, keepdims=True))
        out_ref[i] = shifted - lse

        if Tp != T:  # static: only emitted when time was padded to the chunk
            h = jnp.where(t * Tc + i < T, h_new, h)
        else:
            h = h_new
    hstate_ref[...] = h


def rnn_sequence(xs, h0, params, *, time_chunk=8):
    """xs: (T, B, I), h0: (B, H) ->
       (per-step log_softmax outputs (T, B, O), final hidden (B, H))."""
    d = params["dims"]
    T = xs.shape[0]
    B, I, H, O = d["B"], d["I"], d["H"], d["O"]
    Bp, Ip, Hp, Op = d["Bp"], d["Ip"], d["Hp"], d["Op"]
    Np = Hp + Op

    Tc = max(1, min(time_chunk, T))
    n_chunks = pl.cdiv(T, Tc)
    Tp = n_chunks * Tc

    xs_p = jnp.zeros((Tp, Bp, Ip), jnp.float32).at[:T, :B, :I].set(xs)
    h0_p = jnp.zeros((Bp, Hp), jnp.float32).at[:B, :H].set(h0)

    # x contribution + bias hoisted off the serial path: ONE big matmul
    # (M = Tp*Bp rows -> full MXU occupancy), plain XLA before the pallas_call.
    wdt = params["wx"].dtype
    p_all = jnp.dot(xs_p.reshape(Tp * Bp, Ip).astype(wdt), params["wx"],
                    preferred_element_type=jnp.float32)
    p_all = p_all.reshape(Tp, Bp, Np) + params["brow"]

    kernel = functools.partial(_rnn_seq_kernel, Hp, Tc, T, Tp)

    out_p, hT_p = pl.pallas_call(
        kernel,
        out_shape=(
            jax.ShapeDtypeStruct((Tp, Bp, Op), jnp.float32),
            jax.ShapeDtypeStruct((Bp, Hp), jnp.float32),
        ),
        grid=(n_chunks,),
        in_specs=[
            pl.BlockSpec((Tc, Bp, Np), lambda t: (t, 0, 0)),   # P chunk streamed
            pl.BlockSpec((Bp, Hp), lambda t: (0, 0)),          # h0 resident
            pl.BlockSpec((Hp, Np), lambda t: (0, 0)),          # Wh resident
        ],
        out_specs=(
            pl.BlockSpec((Tc, Bp, Op), lambda t: (t, 0, 0)),   # per-step outputs
            pl.BlockSpec((Bp, Hp), lambda t: (0, 0)),          # resident hidden
        ),
        compiler_params=pltpu.CompilerParams(
            dimension_semantics=("arbitrary",)),
    )(p_all, h0_p, params["wh"])

    return out_p[:T, :B, :O], hT_p[:B, :H]


def rnn_forward(x, h, params):
    """Exact RNN.forward: x (B, I), h (B, H) -> (log_softmax (B, O), hidden').

    Convenience wrapper (pads/slices per call).  For multi-step use prefer
    rnn_sequence, which pads once and runs the whole recurrence in a single
    pallas_call (no per-step launch / pad / slice tax).
    """
    out, h_new = rnn_sequence(x[None], h, params, time_chunk=1)
    return out[0], h_new


if __name__ == "__main__":
    B, I, H, O, T = 2, 16, 32, 10, 8

    key = jax.random.PRNGKey(0)
    kx, kh, k1, k2, k3, k4, kseq = jax.random.split(key, 7)

    x = jax.random.normal(kx, (B, I), dtype=jnp.float32)
    h = jax.random.normal(kh, (B, H), dtype=jnp.float32)
    xs = jax.random.normal(kseq, (T, B, I), dtype=jnp.float32)

    # Deterministic nn.Linear-style init (uniform in +-1/sqrt(fan_in)).
    fan_in = I + H
    bound = 1.0 / jnp.sqrt(jnp.float32(fan_in))
    w_i2h = jax.random.uniform(k1, (H, fan_in), jnp.float32, -bound, bound)
    b_i2h = jax.random.uniform(k2, (H,), jnp.float32, -bound, bound)
    w_i2o = jax.random.uniform(k3, (O, fan_in), jnp.float32, -bound, bound)
    b_i2o = jax.random.uniform(k4, (O,), jnp.float32, -bound, bound)

    def ref_step(x_, h_):
        comb = jnp.concatenate([x_, h_], axis=1)
        hn = comb @ w_i2h.T + b_i2h
        lo = jax.nn.log_softmax(comb @ w_i2o.T + b_i2o, axis=1)
        return lo, hn

    # ---- f32 path: exact PyTorch semantics --------------------------------
    params = prepare_params(w_i2h, b_i2h, w_i2o, b_i2o,
                            input_size=I, batch_size=B)

    out, hnew = rnn_forward(x, h, params)
    jax.block_until_ready((out, hnew))
    out_r, hnew_r = ref_step(x, h)
    assert jnp.allclose(hnew, hnew_r, atol=1e-5), "hidden mismatch"
    assert jnp.allclose(out, out_r, atol=1e-5), "output mismatch"

    outs, hT = rnn_sequence(xs, h, params)
    jax.block_until_ready((outs, hT))
    h_run = h
    outs_r = []
    for t in range(T):
        o_r, h_run = ref_step(xs[t], h_run)
        outs_r.append(o_r)
    outs_r = jnp.stack(outs_r)
    assert jnp.allclose(outs, outs_r, atol=1e-5), "seq output mismatch"
    assert jnp.allclose(hT, h_run, atol=1e-5), "seq final hidden mismatch"

    # ---- exercise the time-padding path (T not a multiple of the chunk) ----
    outs_c, hT_c = rnn_sequence(xs, h, params, time_chunk=3)   # Tp=9 > T=8
    jax.block_until_ready((outs_c, hT_c))
    assert jnp.allclose(outs_c, outs_r, atol=1e-5), "chunked seq output mismatch"
    assert jnp.allclose(hT_c, h_run, atol=1e-5), "chunked final hidden mismatch"

    # ---- bf16 MXU path: bf16 matmul operands, f32 accumulation / carried
    # hidden / softmax.  Checked loosely vs the f32 reference (bf16 weight
    # rounding gives ~1e-2-scale numerical differences). --------------------
    params_bf16 = prepare_params(w_i2h, b_i2h, w_i2o, b_i2o,
                                 input_size=I, batch_size=B,
                                 weight_dtype=jnp.bfloat16)
    outs16, hT16 = rnn_sequence(xs, h, params_bf16)
    jax.block_until_ready((outs16, hT16))
    assert jnp.allclose(outs16, outs_r, atol=1e-1), "bf16 seq output mismatch"
    assert jnp.allclose(hT16, h_run, atol=1e-1), "bf16 final hidden mismatch"

    print("KERNEL_OK")
</pallas_src>

<mosaic_0001>
module attributes {stable_mosaic.version = 11 : i64} {
  func.func @_rnn_seq_kernel(%arg0: i32, %arg1: memref<1x8x256xf32, #tpu.memory_space<vmem>>, %arg2: memref<8x128xf32, #tpu.memory_space<vmem>>, %arg3: memref<128x256xf32, #tpu.memory_space<vmem>>, %arg4: memref<1x8x128xf32, #tpu.memory_space<vmem>>, %arg5: memref<8x128xf32, #tpu.memory_space<vmem>>) attributes {dimension_semantics = [#tpu.dimension_semantics<arbitrary>], iteration_bounds = array<i64: 1>, scalar_prefetch = 0 : i64, scratch_operands = 0 : i64, tpu.core_type = #tpu.core_type<tc>, window_params = [{transform_indices = @transform_0, window_bounds = array<i64: 1, 8, 256>}, {pipeline_mode = #tpu.pipeline_mode<synchronous>, transform_indices = @transform_1, window_bounds = array<i64: 8, 128>}, {pipeline_mode = #tpu.pipeline_mode<synchronous>, transform_indices = @transform_2, window_bounds = array<i64: 128, 256>}, {transform_indices = @transform_3, window_bounds = array<i64: 1, 8, 128>}, {pipeline_mode = #tpu.pipeline_mode<synchronous>, transform_indices = @transform_4, window_bounds = array<i64: 8, 128>}]} {
    %c0_i32 = arith.constant 0 : i32
    %0 = arith.cmpi eq, %arg0, %c0_i32 : i32
    %1 = arith.extui %0 : i1 to i32
    %c0_i32_0 = arith.constant 0 : i32
    %2 = arith.cmpi ne, %1, %c0_i32_0 : i32
    scf.if %2 {
      %c0_14 = arith.constant 0 : index
      %c0_15 = arith.constant 0 : index
      %25 = vector.load %arg2[%c0_14, %c0_15] : memref<8x128xf32, #tpu.memory_space<vmem>>, vector<8x128xf32>
      %c0_16 = arith.constant 0 : index
      %c0_17 = arith.constant 0 : index
      %26 = vector.load %arg5[%c0_16, %c0_17] : memref<8x128xf32, #tpu.memory_space<vmem>>, vector<8x128xf32>
      tpu.vector_store %arg5[%c0_16, %c0_17], %25 {strides = array<i32>} : memref<8x128xf32, #tpu.memory_space<vmem>>, vector<8x128xf32>,
    } else {
    }
    %c0 = arith.constant 0 : index
    %c0_1 = arith.constant 0 : index
    %3 = vector.load %arg3[%c0, %c0_1] : memref<128x256xf32, #tpu.memory_space<vmem>>, vector<128x256xf32>
    %c0_2 = arith.constant 0 : index
    %c0_3 = arith.constant 0 : index
    %4 = vector.load %arg5[%c0_2, %c0_3] : memref<8x128xf32, #tpu.memory_space<vmem>>, vector<8x128xf32>
    %cst = arith.constant dense<0.000000e+00> : vector<8x256xf32>
    %5 = tpu.matmul %4, %3, %cst {dimension_numbers = #tpu.dot_dimension_numbers<[1], [0], [0], [1], [0, 0, 1, 1], [], []>} : vector<8x128xf32>, vector<128x256xf32>, vector<8x256xf32> -> vector<8x256xf32>
    %c0_4 = arith.constant 0 : index
    %c0_5 = arith.constant 0 : index
    %c0_6 = arith.constant 0 : index
    %6 = vector.load %arg1[%c0_4, %c0_5, %c0_6] : memref<1x8x256xf32, #tpu.memory_space<vmem>>, vector<1x8x256xf32>
    %7 = vector.shape_cast %6 : vector<1x8x256xf32> to vector<8x256xf32>
    %8 = arith.addf %5, %7 : vector<8x256xf32>
    %9 = vector.extract_strided_slice %8 {offsets = [0, 0], sizes = [8, 128], strides = [1, 1]} : vector<8x256xf32> to vector<8x128xf32>
    %10 = vector.extract_strided_slice %8 {offsets = [0, 128], sizes = [8, 128], strides = [1, 1]} : vector<8x256xf32> to vector<8x128xf32>
    %cst_7 = arith.constant dense<0xFF800000> : vector<8xf32>
    %11 = vector.multi_reduction <maximumf>, %10, %cst_7 [1] : vector<8x128xf32> to vector<8xf32>
    %12 = vector.shape_cast %11 : vector<8xf32> to vector<8x1xf32>
    %13 = vector.broadcast %12 : vector<8x1xf32> to vector<8x128xf32>
    %14 = arith.subf %10, %13 : vector<8x128xf32>
    %15 = math.exp %14 : vector<8x128xf32>
    %cst_8 = arith.constant dense<0.000000e+00> : vector<8xf32>
    %16 = vector.multi_reduction <add>, %15, %cst_8 [1] : vector<8x128xf32> to vector<8xf32>
    %17 = vector.shape_cast %16 : vector<8xf32> to vector<8x1xf32>
    %18 = math.log %17 : vector<8x1xf32>
    %19 = vector.broadcast %18 : vector<8x1xf32> to vector<8x128xf32>
    %20 = arith.subf %14, %19 : vector<8x128xf32>
    %c0_9 = arith.constant 0 : index
    %c0_10 = arith.constant 0 : index
    %c0_11 = arith.constant 0 : index
    %21 = vector.load %arg4[%c0_9, %c0_10, %c0_11] : memref<1x8x128xf32, #tpu.memory_space<vmem>>, vector<1x8x128xf32>
    %22 = vector.shape_cast %21 : vector<1x8x128xf32> to vector<8x128xf32>
    %23 = vector.shape_cast %20 : vector<8x128xf32> to vector<1x8x128xf32>
    tpu.vector_store %arg4[%c0_9, %c0_10, %c0_11], %23 {strides = array<i32>} : memref<1x8x128xf32, #tpu.memory_space<vmem>>, vector<1x8x128xf32>,
    %c0_12 = arith.constant 0 : index
    %c0_13 = arith.constant 0 : index
    %24 = vector.load %arg5[%c0_12, %c0_13] : memref<8x128xf32, #tpu.memory_space<vmem>>, vector<8x128xf32>
    tpu.vector_store %arg5[%c0_12, %c0_13], %9 {strides = array<i32>} : memref<8x128xf32, #tpu.memory_space<vmem>>, vector<8x128xf32>,
    return
  }
  func.func @transform_0(%arg0: i32) -> (i32, i32, i32) {
    %c0_i32 = arith.constant 0 : i32
    %c0_i32_0 = arith.constant 0 : i32
    %c0_i32_1 = arith.constant 0 : i32
    return %arg0, %c0_i32, %c0_i32_0 : i32, i32, i32
  }
  func.func @transform_1(%arg0: i32) -> (i32, i32) {
    %c0_i32 = arith.constant 0 : i32
    %c0_i32_0 = arith.constant 0 : i32
    %c0_i32_1 = arith.constant 0 : i32
    return %c0_i32, %c0_i32_0 : i32, i32
  }
  func.func @transform_2(%arg0: i32) -> (i32, i32) {
    %c0_i32 = arith.constant 0 : i32
    %c0_i32_0 = arith.constant 0 : i32
    %c0_i32_1 = arith.constant 0 : i32
    return %c0_i32, %c0_i32_0 : i32, i32
  }
  func.func @transform_3(%arg0: i32) -> (i32, i32, i32) {
    %c0_i32 = arith.constant 0 : i32
    %c0_i32_0 = arith.constant 0 : i32
    %c0_i32_1 = arith.constant 0 : i32
    return %arg0, %c0_i32, %c0_i32_0 : i32, i32, i32
  }
  func.func @transform_4(%arg0: i32) -> (i32, i32) {
    %c0_i32 = arith.constant 0 : i32
    %c0_i32_0 = arith.constant 0 : i32
    %c0_i32_1 = arith.constant 0 : i32
    return %c0_i32, %c0_i32_0 : i32, i32
  }
}

</mosaic_0001>

<llo_original>
// kernel: tpu_custom_call.1
$region0: #{tpu_custom_call.1}
  #allocation0 [shape = 'u32[]', space=smem, size = 0x4, offset = 0x4, fixed_abs, tag = 'smem constant byte address 0x4 - core index']
  #allocation1 [shape = 'u32[144,128]{1,0:T(1,128)}', space=vmem, size = 0x12000, scoped, tag = 'internal scratch']
  %s0 = inlined_call_operand.hbm [shape: f32[1,8,256], index: 0, kind: input, shape index: {}]
  %s1 = inlined_call_operand.hbm [shape: f32[8,128], index: 1, kind: input, shape index: {}]
  %s2 = inlined_call_operand.hbm [shape: f32[128,256], index: 2, kind: input, shape index: {}]
  %s3 = inlined_call_operand.hbm [shape: f32[1,8,128], index: 3, kind: output, shape index: {0}]
  %s4 = inlined_call_operand.hbm [shape: f32[8,128], index: 4, kind: output, shape index: {1}]
  %5 = xla_tuple %s3, %s4
  %s6 = sld [smem:[#allocation0]]
  $region46: #{tpu_custom_call.1} parent=0
    _
  %s8 = ssub.s32 1, %s6
  %s9 = scalar_select 0, %s8, %s6
  $region1: #{tpu_custom_call.1} parent=0
    #allocation2 [shape = 'u8[8192]{0}', space=vmem, size = 0x2000, scoped, tag = 'input window, operand 0, single buffered']
    #allocation3 [shape = 's32[1]{0}', space=sflag, size = 0x4, scoped, tag = 'scoped memory for tpu_custom_call.1']
    #allocation4 [shape = 's32[1]{0}', space=sflag, size = 0x4, scoped, tag = 'scoped memory for tpu_custom_call.1']
    #allocation5 [shape = 'u8[4096]{0}', space=vmem, size = 0x1000, scoped, tag = 'input window, operand 1, single buffered']
    #allocation6 [shape = 's32[1]{0}', space=sflag, size = 0x4, scoped, tag = 'scoped memory for tpu_custom_call.1']
    #allocation7 [shape = 'u8[131072]{0}', space=vmem, size = 0x20000, scoped, tag = 'input window, operand 2, single buffered']
    #allocation8 [shape = 'u8[4096]{0}', space=vmem, size = 0x1000, scoped, tag = 'output window, operand 0, single buffered']
    #allocation9 [shape = 'u8[4096]{0}', space=vmem, size = 0x1000, scoped, tag = 'output window, operand 1, single buffered']
    #allocation10 [shape = 's32[1]{0}', space=sflag, size = 0x4, scoped, tag = 'scoped memory for tpu_custom_call.1']
    %10 = vsyncpa [#allocation3], 0
    %11 = vsyncpa [#allocation6], 0
    %12 = vsyncpa [#allocation4], 0
    %13 = vsyncpa [#allocation10], 0
    // Predicated region
    $region2: #{tpu_custom_call.1} parent=1 // pred_check
      _
    $region3: #{tpu_custom_call.1} parent=1 // pred_check_branch
      %15 = sbr.rel (0) target = $region5
    $region4: #{tpu_custom_call.1} parent=1 // pred_region
      %s17 = ssub.s32 256, 256
      %18 = vsyncadd [#allocation3], %s17
      %s20 = sshll.u32 [#allocation2], 4
      %s21 = int_to_ptr.vmem [resolvable:$true] %s20
      %23 = dma.hbm_to_vmem [thread:$0]  %s0, 256, %s21, [#allocation3]
    $region5: #{tpu_custom_call.1} parent=1 // pred_fallthru
      _
    // Predicated region
    $region6: #{tpu_custom_call.1} parent=1 // pred_check
      _
    $region7: #{tpu_custom_call.1} parent=1 // pred_check_branch
      %25 = sbr.rel (0) target = $region9
    $region8: #{tpu_custom_call.1} parent=1 // pred_region
      %s27 = ssub.s32 128, 128
      %28 = vsyncadd [#allocation6], %s27
      %s30 = sshll.u32 [#allocation5], 4
      %s31 = int_to_ptr.vmem [resolvable:$true] %s30
      %33 = dma.hbm_to_vmem [thread:$0]  %s1, 128, %s31, [#allocation6]
    $region9: #{tpu_custom_call.1} parent=1 // pred_fallthru
      _
    // Predicated region
    $region10: #{tpu_custom_call.1} parent=1 // pred_check
      _
    $region11: #{tpu_custom_call.1} parent=1 // pred_check_branch
      %35 = sbr.rel (0) target = $region13
    $region12: #{tpu_custom_call.1} parent=1 // pred_region
      %s37 = ssub.s32 4096, 4096
      %38 = vsyncadd [#allocation6], %s37
      %s39 = sshll.u32 [#allocation7], 4
      %s40 = int_to_ptr.vmem [resolvable:$true] %s39
      %45 = dma.hbm_to_vmem [thread:$0]  %s2, 4096, %s40, [#allocation6], 256, 256, 16
    $region13: #{tpu_custom_call.1} parent=1 // pred_fallthru
      _
    // Predicated region
    $region14: #{tpu_custom_call.1} parent=1 // pred_check
      _
    $region15: #{tpu_custom_call.1} parent=1 // pred_check_branch
      %47 = sbr.rel (0) target = $region17
    $region16: #{tpu_custom_call.1} parent=1 // pred_region
      %48 = dma.done [#allocation3], 256
    $region17: #{tpu_custom_call.1} parent=1 // pred_fallthru
      _
    // Predicated region
    $region18: #{tpu_custom_call.1} parent=1 // pred_check
      _
    $region19: #{tpu_custom_call.1} parent=1 // pred_check_branch
      %50 = sbr.rel (0) target = $region21
    $region20: #{tpu_custom_call.1} parent=1 // pred_region
      %51 = dma.done [#allocation6], 128
    $region21: #{tpu_custom_call.1} parent=1 // pred_fallthru
      _
    // Predicated region
    $region22: #{tpu_custom_call.1} parent=1 // pred_check
      _
    $region23: #{tpu_custom_call.1} parent=1 // pred_check_branch
      %53 = sbr.rel (0) target = $region25
    $region24: #{tpu_custom_call.1} parent=1 // pred_region
      %54 = dma.done [#allocation6], 4096
    $region25: #{tpu_custom_call.1} parent=1 // pred_fallthru
      _
    %p55 = scmp.eq.s32.totalorder 0, 0
    // Predicated region
    $region26: #{tpu_custom_call.1} parent=1 // pred_check
      %p56 = pneg %p55
    $region27: #{tpu_custom_call.1} parent=1 // pred_check_branch
      %58 = sbr.rel (%p56) target = $region29
    $region28: #{tpu_custom_call.1} parent=1 // pred_region
      %v59 = vld [vmem:[#allocation5] sm:$0xff]
      %60 = vst [vmem:[#allocation9] sm:$0xff] %v59
    $region29: #{tpu_custom_call.1} parent=1 // pred_fallthru
      _
    %v61 = vld [vmem:[#allocation7] sm:$0xff]
    %v62 = vld [vmem:[#allocation7 + $0x8] sm:$0xff]
    %v63 = vld [vmem:[#allocation7 + $0x10] sm:$0xff]
    %v64 = vld [vmem:[#allocation7 + $0x18] sm:$0xff]
    %v65 = vld [vmem:[#allocation7 + $0x20] sm:$0xff]
    %v66 = vld [vmem:[#allocation7 + $0x28] sm:$0xff]
    %v67 = vld [vmem:[#allocation7 + $0x30] sm:$0xff]
    %v68 = vld [vmem:[#allocation7 + $0x38] sm:$0xff]
    %v69 = vld [vmem:[#allocation7 + $0x40] sm:$0xff]
    %v70 = vld [vmem:[#allocation7 + $0x48] sm:$0xff]
    %v71 = vld [vmem:[#allocation7 + $0x50] sm:$0xff]
    %v72 = vld [vmem:[#allocation7 + $0x58] sm:$0xff]
    %v73 = vld [vmem:[#allocation7 + $0x60] sm:$0xff]
    %v74 = vld [vmem:[#allocation7 + $0x68] sm:$0xff]
    %v75 = vld [vmem:[#allocation7 + $0x70] sm:$0xff]
    %v76 = vld [vmem:[#allocation7 + $0x78] sm:$0xff]
    %v77 = vld [vmem:[#allocation7 + $0x80] sm:$0xff]
    %v78 = vld [vmem:[#allocation7 + $0x88] sm:$0xff]
    %v79 = vld [vmem:[#allocation7 + $0x90] sm:$0xff]
    %v80 = vld [vmem:[#allocation7 + $0x98] sm:$0xff]
    %v81 = vld [vmem:[#allocation7 + $0xa0] sm:$0xff]
    %v82 = vld [vmem:[#allocation7 + $0xa8] sm:$0xff]
    %v83 = vld [vmem:[#allocation7 + $0xb0] sm:$0xff]
    %v84 = vld [vmem:[#allocation7 + $0xb8] sm:$0xff]
    %v85 = vld [vmem:[#allocation7 + $0xc0] sm:$0xff]
    %v86 = vld [vmem:[#allocation7 + $0xc8] sm:$0xff]
    %v87 = vld [vmem:[#allocation7 + $0xd0] sm:$0xff]
    %v88 = vld [vmem:[#allocation7 + $0xd8] sm:$0xff]
    %v89 = vld [vmem:[#allocation7 + $0xe0] sm:$0xff]
    %v90 = vld [vmem:[#allocation7 + $0xe8] sm:$0xff]
    %v91 = vld [vmem:[#allocation7 + $0xf0] sm:$0xff]
    %v92 = vld [vmem:[#allocation7 + $0xf8] sm:$0xff]
    %v93 = vld [vmem:[#allocation9] sm:$0xff]
    %v94 = vld [vmem:[#allocation2] sm:$0xff]
    %v95 = vld [vmem:[#allocation2 + $0x8] sm:$0xff]
    %96 = vmatprep.subr.mxu0 %v62
    %97 = vmatpush1.msra.mxu0 %v61
    %98 = vmatprep.subr.mxu0 %v64
    %99 = vmatpush1.msra.mxu0 %v63
    %100 = vmatprep.subr.mxu0 %v66
    %101 = vmatpush1.msra.mxu0 %v65
    %102 = vmatprep.subr.mxu0 %v68
    %103 = vmatpush1.msra.mxu0 %v67
    %104 = vmatprep.subr.mxu0 %v70
    %105 = vmatpush1.msra.mxu0 %v69
    %106 = vmatprep.subr.mxu0 %v72
    %107 = vmatpush1.msra.mxu0 %v71
    %108 = vmatprep.subr.mxu0 %v74
    %109 = vmatpush1.msra.mxu0 %v73
    %110 = vmatprep.subr.mxu0 %v76
    %111 = vmatpush1.msra.mxu0 %v75
    %112 = vmatprep.subr.mxu0 %v78
    %113 = vmatpush1.msra.mxu0 %v77
    %114 = vmatprep.subr.mxu0 %v80
    %115 = vmatpush1.msra.mxu0 %v79
    %116 = vmatprep.subr.mxu0 %v82
    %117 = vmatpush1.msra.mxu0 %v81
    %118 = vmatprep.subr.mxu0 %v84
    %119 = vmatpush1.msra.mxu0 %v83
    %120 = vmatprep.subr.mxu0 %v86
    %121 = vmatpush1.msra.mxu0 %v85
    %122 = vmatprep.subr.mxu0 %v88
    %123 = vmatpush1.msra.mxu0 %v87
    %124 = vmatprep.subr.mxu0 %v90
    %125 = vmatpush1.msra.mxu0 %v89
    %126 = vmatprep.subr.mxu0 %v92
    %127 = vmatpush1.msra.mxu0 %v91
    %128 = vmatprep.subr.mxu0 0.0
    %129 = vmatpush1.msra.mxu0 0.0
    %130 = vmatprep.subr.mxu0 0.0
    %131 = vmatpush1.msra.mxu0 0.0
    %132 = vmatprep.subr.mxu0 0.0
    %133 = vmatpush1.msra.mxu0 0.0
    %134 = vmatprep.subr.mxu0 0.0
    %135 = vmatpush1.msra.mxu0 0.0
    %136 = vmatprep.subr.mxu0 0.0
    %137 = vmatpush1.msra.mxu0 0.0
    %138 = vmatprep.subr.mxu0 0.0
    %139 = vmatpush1.msra.mxu0 0.0
    %140 = vmatprep.subr.mxu0 0.0
    %141 = vmatpush1.msra.mxu0 0.0
    %142 = vmatprep.subr.mxu0 0.0
    %143 = vmatpush1.msra.mxu0 0.0
    %144 = vmatprep.subr.mxu0 0.0
    %145 = vmatpush1.msra.mxu0 0.0
    %146 = vmatprep.subr.mxu0 0.0
    %147 = vmatpush1.msra.mxu0 0.0
    %148 = vmatprep.subr.mxu0 0.0
    %149 = vmatpush1.msra.mxu0 0.0
    %150 = vmatprep.subr.mxu0 0.0
    %151 = vmatpush1.msra.mxu0 0.0
    %152 = vmatprep.subr.mxu0 0.0
    %153 = vmatpush1.msra.mxu0 0.0
    %154 = vmatprep.subr.mxu0 0.0
    %155 = vmatpush1.msra.mxu0 0.0
    %156 = vmatprep.subr.mxu0 0.0
    %157 = vmatpush1.msra.mxu0 0.0
    %158 = vmatprep.subr.mxu0 0.0
    %159 = vmatpush1.msra.mxu0 0.0
    %160 = vmatprep.mubr.f32.mxu0 0.0
    %161 = vmatmul.mubr.f32.gmra.mrb[0].mxu0 %v93
    %v162 = vpop.f32.mrb[0].mxu0
    %v163 = vadd.f32 %v94, %v162
    %v164 = vpop.f32.mrb[0].mxu0
    %v165 = vadd.f32 %v95, %v164
    %166 = vdwg.mxu0
    %167 = vmax.xlane.f32.xlu0 %v165
    %v168 = vpop.xlane.xlu0 %167
    %v169 = vsub.f32 %v165, %v168
    %v170 = vmul.f32 %v169, 1.442695
    %v171 = vpow.pop %v170
    %172 = vadd.xlane.f32.xlu0 %v171
    %v173 = vpop.xlane.xlu0 %172
    %v174 = vlog2.pop %v173
    %v175 = vmul.f32 %v174, 0.6931472
    %v176 = vsub.f32 %v169, %v175
    %177 = vst [vmem:[#allocation8] sm:$0xff] %v176
    %178 = vst [vmem:[#allocation9] sm:$0xff] %v163
    // Predicated region
    $region30: #{tpu_custom_call.1} parent=1 // pred_check
      _
    $region31: #{tpu_custom_call.1} parent=1 // pred_check_branch
      %180 = sbr.rel (0) target = $region33
    $region32: #{tpu_custom_call.1} parent=1 // pred_region
      %s182 = ssub.s32 128, 128
      %183 = vsyncadd [#allocation4], %s182
      %s185 = sshll.u32 [#allocation8], 4
      %s186 = int_to_ptr.vmem [resolvable:$true] %s185
      %188 = dma.vmem_to_hbm [thread:$0]  %s186, 128, %s3, [#allocation4]
    $region33: #{tpu_custom_call.1} parent=1 // pred_fallthru
      _
    // Predicated region
    $region34: #{tpu_custom_call.1} parent=1 // pred_check
      _
    $region35: #{tpu_custom_call.1} parent=1 // pred_check_branch
      %190 = sbr.rel (0) target = $region37
    $region36: #{tpu_custom_call.1} parent=1 // pred_region
      %s192 = ssub.s32 128, 128
      %193 = vsyncadd [#allocation10], %s192
      %s195 = sshll.u32 [#allocation9], 4
      %s196 = int_to_ptr.vmem [resolvable:$true] %s195
      %198 = dma.vmem_to_hbm [thread:$0]  %s196, 128, %s4, [#allocation10]
    $region37: #{tpu_custom_call.1} parent=1 // pred_fallthru
      _
    // Predicated region
    $region38: #{tpu_custom_call.1} parent=1 // pred_check
      _
    $region39: #{tpu_custom_call.1} parent=1 // pred_check_branch
      %200 = sbr.rel (0) target = $region41
    $region40: #{tpu_custom_call.1} parent=1 // pred_region
      %201 = dma.done [#allocation4], 128
    $region41: #{tpu_custom_call.1} parent=1 // pred_fallthru
      _
    // Predicated region
    $region42: #{tpu_custom_call.1} parent=1 // pred_check
      _
    $region43: #{tpu_custom_call.1} parent=1 // pred_check_branch
      %203 = sbr.rel (0) target = $region45
    $region44: #{tpu_custom_call.1} parent=1 // pred_region
      %204 = dma.done [#allocation10], 128
    $region45: #{tpu_custom_call.1} parent=1 // pred_fallthru
      _
    %205 = vsyncpa [#allocation3], 1
    %206 = vsyncpa [#allocation6], 1
    %207 = vsyncpa [#allocation4], 1
    %208 = vsyncpa [#allocation10], 1

</llo_original>
